<compile_context>
chip_gen: v5e
topology: v5e:2x2
jax: 0.10.0
libtpu: 0.0.40
codegen_flags: <defaults>
</compile_context>

<pallas_src>
import functools

import jax
import jax.numpy as jnp
from jax.experimental import pallas as pl
from jax.experimental.pallas import tpu as pltpu

EPS = 1e-5
DEFAULT_MAX_TILE_ROWS = 2048  # v7x-safe batch tile cap (64 MiB physical VMEM).


def _round_up(n, m):
    return -(-n // m) * m


def prepare_params(w1, b1, gamma, beta, w2, b2, *, linear2_dtype=jnp.bfloat16):
    """One-time weight prep (call at module init, NOT per forward).

    b1 is dropped: training-mode BatchNorm subtracts the batch mean immediately
    after Linear-1, so (x@W1 + b1) - mean(x@W1 + b1) == x@W1 - mean(x@W1).
    """
    del b1
    gb = jnp.concatenate(
        [jnp.reshape(gamma, (1, -1)), jnp.reshape(beta, (1, -1))], axis=0
    ).astype(jnp.float32)
    return (jnp.asarray(w1, jnp.float32),          # Linear-1 stays f32 (feeds BN)
            jnp.asarray(w2, linear2_dtype),        # Linear-2 weight (bf16 default)
            gb,                                    # (2, H): [gamma; beta]
            jnp.reshape(jnp.asarray(b2, jnp.float32), (1, -1)))   # (1, Din)


def _fi_kernel(x_ref, w1_ref, w2_ref, gb_ref, b2_ref, o_ref, stats_ref,
               *, inv_batch):
    phase = pl.program_id(0)   # 0: accumulate BN stats, 1: apply
    tile = pl.program_id(1)

    x = x_ref[...]                                                # (Bt, Din) f32
    # Linear-1 (f32).  Recomputed in phase 1: cheaper in HBM bytes than
    # round-tripping h through HBM, and the kernel is memory-bound.
    h = jnp.dot(x, w1_ref[...], preferred_element_type=jnp.float32)   # (Bt, H)

    @pl.when((phase == 0) & (tile == 0))
    def _init():
        stats_ref[...] = jnp.zeros_like(stats_ref)

    @pl.when(phase == 0)
    def _accumulate():
        # One-pass stats: column sums and sums of squares (f32 accumulation).
        stats_ref[0:1, :] += jnp.sum(h, axis=0, keepdims=True)
        stats_ref[1:2, :] += jnp.sum(h * h, axis=0, keepdims=True)

    @pl.when((phase == 1) & (tile == 0))
    def _finalize_stats():
        # Fold BN (batch stats, biased variance) + affine into one per-column
        # scale/shift, stored in place of the raw sums.
        mean = stats_ref[0:1, :] * inv_batch
        var = stats_ref[1:2, :] * inv_batch - mean * mean
        scale = gb_ref[0:1, :] * jax.lax.rsqrt(var + EPS)          # rsqrt -> EUP
        shift = gb_ref[1:2, :] - mean * scale
        stats_ref[0:1, :] = scale
        stats_ref[1:2, :] = shift

    @pl.when(phase == 1)
    def _apply():
        h_act = jnp.maximum(h * stats_ref[0:1, :] + stats_ref[1:2, :], 0.0)
        y = jnp.dot(h_act.astype(w2_ref.dtype), w2_ref[...],
                    preferred_element_type=jnp.float32)            # (Bt, Din)
        o_ref[...] = (y + b2_ref[...] + x).astype(o_ref.dtype)


@functools.partial(jax.jit, static_argnames=("block_rows",))
def feature_interaction(x, w1, w2, gb, b2, *, block_rows=None):
    """forward(x) = Linear2(ReLU(BN(Linear1(x)))) + x, BN in training mode."""
    B, Din = x.shape
    H = w1.shape[1]

    cap = block_rows if block_rows is not None else DEFAULT_MAX_TILE_ROWS
    num_tiles = pl.cdiv(B, cap)
    bt = _round_up(pl.cdiv(B, num_tiles), 8)       # sublane-aligned batch tile
    b_pad = bt * num_tiles
    # Zero batch-padding is exact: padded rows give h == 0 (b1 was folded away),
    # contribute nothing to the sums, and the stats divide by the true B.
    xp = jnp.pad(x, ((0, b_pad - B), (0, 0))) if b_pad != B else x

    const = lambda shape: pl.BlockSpec(shape, lambda p, t: (0, 0))
    out = pl.pallas_call(
        functools.partial(_fi_kernel, inv_batch=1.0 / B),
        out_shape=jax.ShapeDtypeStruct((b_pad, Din), x.dtype),
        grid=(2, num_tiles),                        # (phase, batch tile)
        in_specs=[
            pl.BlockSpec((bt, Din), lambda p, t: (t, 0)),   # x tile
            const((Din, H)),                                # W1  (VMEM-resident)
            const((H, Din)),                                # W2  (VMEM-resident)
            const((2, H)),                                  # [gamma; beta]
            const((1, Din)),                                # b2
        ],
        # phase * tile keeps output-block visits consecutive and avoids flushing
        # any unwritten block while phase 0 only accumulates statistics.
        out_specs=pl.BlockSpec((bt, Din), lambda p, t: (p * t, 0)),
        scratch_shapes=[pltpu.VMEM((2, H), jnp.float32)],   # sums -> scale/shift
        compiler_params=pltpu.CompilerParams(
            # Phase axis is sequential and the tile axis carries the stats
            # reduction, so both stay "arbitrary" (see TODO above for v7x).
            dimension_semantics=("arbitrary", "arbitrary"),
            vmem_limit_bytes=48 * 1024 * 1024,
        ),
    )(xp, w1, w2, gb, b2)
    return out[:B] if b_pad != B else out


def reference(x, w1, b1, gamma, beta, w2, b2):
    h = x @ w1 + b1
    mean = h.mean(axis=0, keepdims=True)
    var = ((h - mean) ** 2).mean(axis=0, keepdims=True)
    h = (h - mean) / jnp.sqrt(var + EPS) * gamma + beta
    h = jnp.maximum(h, 0.0)
    return h @ w2 + b2 + x


if __name__ == "__main__":
    B, IN_DIM, HIDDEN = 8, 32, 64

    key = jax.random.PRNGKey(0)
    kx, k1, kb1, k2, kb2, kg, kbt, kx2 = jax.random.split(key, 8)

    x = jax.random.normal(kx, (B, IN_DIM), dtype=jnp.float32)

    bound1 = 1.0 / (IN_DIM ** 0.5)
    w1 = jax.random.uniform(k1, (IN_DIM, HIDDEN), jnp.float32, -bound1, bound1)
    b1 = jax.random.uniform(kb1, (1, HIDDEN), jnp.float32, -bound1, bound1)
    bound2 = 1.0 / (HIDDEN ** 0.5)
    w2 = jax.random.uniform(k2, (HIDDEN, IN_DIM), jnp.float32, -bound2, bound2)
    b2 = jax.random.uniform(kb2, (1, IN_DIM), jnp.float32, -bound2, bound2)
    # Non-trivial BN affine params (PyTorch defaults are gamma=1, beta=0; the
    # kernel semantics are identical for any values).
    gamma = jax.random.uniform(kg, (1, HIDDEN), jnp.float32, 0.5, 1.5)
    beta = jax.random.uniform(kbt, (1, HIDDEN), jnp.float32, -0.5, 0.5)

    ref = reference(x, w1, b1, gamma, beta, w2, b2)

    # Exact path: Linear-2 weight kept in f32; tight tolerance.
    params_exact = prepare_params(w1, b1, gamma, beta, w2, b2,
                                  linear2_dtype=jnp.float32)
    out_f32 = jax.block_until_ready(feature_interaction(x, *params_exact))
    assert out_f32.shape == (B, IN_DIM)
    assert jnp.allclose(out_f32, ref, atol=1e-4, rtol=1e-4)

    # Default fast path: Linear-2 in bf16 (f32 accumulation).  Linear-1 and all
    # BN / elementwise math stay f32 (quantizing h before normalization would
    # amplify rounding; the kernel is memory-bound so f32 there is free).
    params = prepare_params(w1, b1, gamma, beta, w2, b2)
    out_bf16 = jax.block_until_ready(feature_interaction(x, *params))
    assert out_bf16.shape == (B, IN_DIM)
    assert jnp.allclose(out_bf16, ref, atol=5e-2, rtol=5e-2)

    # Multi-tile path: batch split across grid tiles with zero-row padding;
    # BatchNorm statistics must stay global across tiles.
    B2 = 20
    x2 = jax.random.normal(kx2, (B2, IN_DIM), dtype=jnp.float32)
    ref2 = reference(x2, w1, b1, gamma, beta, w2, b2)
    out2 = jax.block_until_ready(feature_interaction(x2, *params, block_rows=8))
    assert out2.shape == (B2, IN_DIM)
    assert jnp.allclose(out2, ref2, atol=5e-2, rtol=5e-2)

    print("KERNEL_OK")
</pallas_src>

<mosaic_0001>
module attributes {stable_mosaic.version = 11 : i64} {
  func.func @_fi_kernel(%arg0: i32, %arg1: i32, %arg2: memref<8x32xf32, #tpu.memory_space<vmem>>, %arg3: memref<32x64xf32, #tpu.memory_space<vmem>>, %arg4: memref<64x32xf32, #tpu.memory_space<vmem>>, %arg5: memref<2x64xf32, #tpu.memory_space<vmem>>, %arg6: memref<1x32xf32, #tpu.memory_space<vmem>>, %arg7: memref<8x32xf32, #tpu.memory_space<vmem>>, %arg8: memref<2x64xf32, #tpu.memory_space<vmem>>) attributes {dimension_semantics = [#tpu.dimension_semantics<arbitrary>, #tpu.dimension_semantics<arbitrary>], iteration_bounds = array<i64: 2, 1>, scalar_prefetch = 0 : i64, scratch_operands = 1 : i64, tpu.core_type = #tpu.core_type<tc>, window_params = [{transform_indices = @transform_0, window_bounds = array<i64: 8, 32>}, {pipeline_mode = #tpu.pipeline_mode<synchronous>, transform_indices = @transform_1, window_bounds = array<i64: 32, 64>}, {pipeline_mode = #tpu.pipeline_mode<synchronous>, transform_indices = @transform_2, window_bounds = array<i64: 64, 32>}, {pipeline_mode = #tpu.pipeline_mode<synchronous>, transform_indices = @transform_3, window_bounds = array<i64: 2, 64>}, {pipeline_mode = #tpu.pipeline_mode<synchronous>, transform_indices = @transform_4, window_bounds = array<i64: 1, 32>}, {transform_indices = @transform_5, window_bounds = array<i64: 8, 32>}]} {
    %c0 = arith.constant 0 : index
    %c0_0 = arith.constant 0 : index
    %0 = vector.load %arg2[%c0, %c0_0] : memref<8x32xf32, #tpu.memory_space<vmem>>, vector<8x32xf32>
    %c0_1 = arith.constant 0 : index
    %c0_2 = arith.constant 0 : index
    %1 = vector.load %arg3[%c0_1, %c0_2] : memref<32x64xf32, #tpu.memory_space<vmem>>, vector<32x64xf32>
    %cst = arith.constant dense<0.000000e+00> : vector<8x64xf32>
    %2 = tpu.matmul %0, %1, %cst {dimension_numbers = #tpu.dot_dimension_numbers<[1], [0], [0], [1], [0, 0, 1, 1], [], []>} : vector<8x32xf32>, vector<32x64xf32>, vector<8x64xf32> -> vector<8x64xf32>
    %c0_i32 = arith.constant 0 : i32
    %3 = arith.cmpi eq, %arg0, %c0_i32 : i32
    %c0_i32_3 = arith.constant 0 : i32
    %4 = arith.cmpi eq, %arg1, %c0_i32_3 : i32
    %5 = arith.andi %3, %4 : i1
    %6 = arith.extui %5 : i1 to i32
    %c0_i32_4 = arith.constant 0 : i32
    %7 = arith.cmpi ne, %6, %c0_i32_4 : i32
    scf.if %7 {
      %cst_11 = arith.constant 0.000000e+00 : f32
      %19 = vector.broadcast %cst_11 : f32 to vector<2x64xf32>
      %c0_12 = arith.constant 0 : index
      %c0_13 = arith.constant 0 : index
      %20 = vector.load %arg8[%c0_12, %c0_13] : memref<2x64xf32, #tpu.memory_space<vmem>>, vector<2x64xf32>
      tpu.vector_store %arg8[%c0_12, %c0_13], %19 {strides = array<i32>} : memref<2x64xf32, #tpu.memory_space<vmem>>, vector<2x64xf32>,
    } else {
    }
    %c0_i32_5 = arith.constant 0 : i32
    %8 = arith.cmpi eq, %arg0, %c0_i32_5 : i32
    %9 = arith.extui %8 : i1 to i32
    %c0_i32_6 = arith.constant 0 : i32
    %10 = arith.cmpi ne, %9, %c0_i32_6 : i32
    scf.if %10 {
      %c0_11 = arith.constant 0 : index
      %c0_12 = arith.constant 0 : index
      %19 = vector.load %arg8[%c0_11, %c0_12] : memref<2x64xf32, #tpu.memory_space<vmem>>, vector<1x64xf32>
      %cst_13 = arith.constant dense<0.000000e+00> : vector<64xf32>
      %20 = vector.multi_reduction <add>, %2, %cst_13 [0] : vector<8x64xf32> to vector<64xf32>
      %21 = vector.shape_cast %20 : vector<64xf32> to vector<1x64xf32>
      %22 = arith.addf %19, %21 : vector<1x64xf32>
      %c0_14 = arith.constant 0 : index
      %c0_15 = arith.constant 0 : index
      %23 = vector.load %arg8[%c0_14, %c0_15] : memref<2x64xf32, #tpu.memory_space<vmem>>, vector<1x64xf32>
      tpu.vector_store %arg8[%c0_14, %c0_15], %22 {strides = array<i32>} : memref<2x64xf32, #tpu.memory_space<vmem>>, vector<1x64xf32>,
      %c1 = arith.constant 1 : index
      %c0_16 = arith.constant 0 : index
      %24 = vector.load %arg8[%c1, %c0_16] : memref<2x64xf32, #tpu.memory_space<vmem>>, vector<1x64xf32>
      %25 = arith.mulf %2, %2 : vector<8x64xf32>
      %cst_17 = arith.constant dense<0.000000e+00> : vector<64xf32>
      %26 = vector.multi_reduction <add>, %25, %cst_17 [0] : vector<8x64xf32> to vector<64xf32>
      %27 = vector.shape_cast %26 : vector<64xf32> to vector<1x64xf32>
      %28 = arith.addf %24, %27 : vector<1x64xf32>
      %c1_18 = arith.constant 1 : index
      %c0_19 = arith.constant 0 : index
      %29 = vector.load %arg8[%c1_18, %c0_19] : memref<2x64xf32, #tpu.memory_space<vmem>>, vector<1x64xf32>
      tpu.vector_store %arg8[%c1_18, %c0_19], %28 {strides = array<i32>} : memref<2x64xf32, #tpu.memory_space<vmem>>, vector<1x64xf32>,
    } else {
    }
    %c1_i32 = arith.constant 1 : i32
    %11 = arith.cmpi eq, %arg0, %c1_i32 : i32
    %c0_i32_7 = arith.constant 0 : i32
    %12 = arith.cmpi eq, %arg1, %c0_i32_7 : i32
    %13 = arith.andi %11, %12 : i1
    %14 = arith.extui %13 : i1 to i32
    %c0_i32_8 = arith.constant 0 : i32
    %15 = arith.cmpi ne, %14, %c0_i32_8 : i32
    scf.if %15 {
      %c0_11 = arith.constant 0 : index
      %c0_12 = arith.constant 0 : index
      %19 = vector.load %arg8[%c0_11, %c0_12] : memref<2x64xf32, #tpu.memory_space<vmem>>, vector<1x64xf32>
      %cst_13 = arith.constant 1.250000e-01 : f32
      %20 = vector.broadcast %cst_13 : f32 to vector<1x64xf32>
      %21 = arith.mulf %19, %20 : vector<1x64xf32>
      %c1 = arith.constant 1 : index
      %c0_14 = arith.constant 0 : index
      %22 = vector.load %arg8[%c1, %c0_14] : memref<2x64xf32, #tpu.memory_space<vmem>>, vector<1x64xf32>
      %cst_15 = arith.constant 1.250000e-01 : f32
      %23 = vector.broadcast %cst_15 : f32 to vector<1x64xf32>
      %24 = arith.mulf %22, %23 : vector<1x64xf32>
      %25 = arith.mulf %21, %21 : vector<1x64xf32>
      %26 = arith.subf %24, %25 : vector<1x64xf32>
      %c0_16 = arith.constant 0 : index
      %c0_17 = arith.constant 0 : index
      %27 = vector.load %arg5[%c0_16, %c0_17] : memref<2x64xf32, #tpu.memory_space<vmem>>, vector<1x64xf32>
      %cst_18 = arith.constant 9.99999974E-6 : f32
      %28 = vector.broadcast %cst_18 : f32 to vector<1x64xf32>
      %29 = arith.addf %26, %28 : vector<1x64xf32>
      %30 = math.rsqrt %29 : vector<1x64xf32>
      %31 = arith.mulf %27, %30 : vector<1x64xf32>
      %c1_19 = arith.constant 1 : index
      %c0_20 = arith.constant 0 : index
      %32 = vector.load %arg5[%c1_19, %c0_20] : memref<2x64xf32, #tpu.memory_space<vmem>>, vector<1x64xf32>
      %33 = arith.mulf %21, %31 : vector<1x64xf32>
      %34 = arith.subf %32, %33 : vector<1x64xf32>
      %c0_21 = arith.constant 0 : index
      %c0_22 = arith.constant 0 : index
      %35 = vector.load %arg8[%c0_21, %c0_22] : memref<2x64xf32, #tpu.memory_space<vmem>>, vector<1x64xf32>
      tpu.vector_store %arg8[%c0_21, %c0_22], %31 {strides = array<i32>} : memref<2x64xf32, #tpu.memory_space<vmem>>, vector<1x64xf32>,
      %c1_23 = arith.constant 1 : index
      %c0_24 = arith.constant 0 : index
      %36 = vector.load %arg8[%c1_23, %c0_24] : memref<2x64xf32, #tpu.memory_space<vmem>>, vector<1x64xf32>
      tpu.vector_store %arg8[%c1_23, %c0_24], %34 {strides = array<i32>} : memref<2x64xf32, #tpu.memory_space<vmem>>, vector<1x64xf32>,
    } else {
    }
    %c1_i32_9 = arith.constant 1 : i32
    %16 = arith.cmpi eq, %arg0, %c1_i32_9 : i32
    %17 = arith.extui %16 : i1 to i32
    %c0_i32_10 = arith.constant 0 : i32
    %18 = arith.cmpi ne, %17, %c0_i32_10 : i32
    scf.if %18 {
      %c0_11 = arith.constant 0 : index
      %c0_12 = arith.constant 0 : index
      %19 = vector.load %arg8[%c0_11, %c0_12] : memref<2x64xf32, #tpu.memory_space<vmem>>, vector<1x64xf32>
      %20 = vector.broadcast %19 : vector<1x64xf32> to vector<8x64xf32>
      %21 = arith.mulf %2, %20 : vector<8x64xf32>
      %c1 = arith.constant 1 : index
      %c0_13 = arith.constant 0 : index
      %22 = vector.load %arg8[%c1, %c0_13] : memref<2x64xf32, #tpu.memory_space<vmem>>, vector<1x64xf32>
      %23 = vector.broadcast %22 : vector<1x64xf32> to vector<8x64xf32>
      %24 = arith.addf %21, %23 : vector<8x64xf32>
      %cst_14 = arith.constant 0.000000e+00 : f32
      %25 = vector.broadcast %cst_14 : f32 to vector<8x64xf32>
      %26 = arith.maximumf %24, %25 : vector<8x64xf32>
      %c0_15 = arith.constant 0 : index
      %c0_16 = arith.constant 0 : index
      %27 = vector.load %arg4[%c0_15, %c0_16] : memref<64x32xf32, #tpu.memory_space<vmem>>, vector<64x32xf32>
      %cst_17 = arith.constant dense<0.000000e+00> : vector<8x32xf32>
      %28 = tpu.matmul %26, %27, %cst_17 {dimension_numbers = #tpu.dot_dimension_numbers<[1], [0], [0], [1], [0, 0, 1, 1], [], []>} : vector<8x64xf32>, vector<64x32xf32>, vector<8x32xf32> -> vector<8x32xf32>
      %c0_18 = arith.constant 0 : index
      %c0_19 = arith.constant 0 : index
      %29 = vector.load %arg6[%c0_18, %c0_19] : memref<1x32xf32, #tpu.memory_space<vmem>>, vector<1x32xf32>
      %30 = vector.broadcast %29 : vector<1x32xf32> to vector<8x32xf32>
      %31 = arith.addf %28, %30 : vector<8x32xf32>
      %32 = arith.addf %31, %0 : vector<8x32xf32>
      %c0_20 = arith.constant 0 : index
      %c0_21 = arith.constant 0 : index
      %33 = vector.load %arg7[%c0_20, %c0_21] : memref<8x32xf32, #tpu.memory_space<vmem>>, vector<8x32xf32>
      tpu.vector_store %arg7[%c0_20, %c0_21], %32 {strides = array<i32>} : memref<8x32xf32, #tpu.memory_space<vmem>>, vector<8x32xf32>,
    } else {
    }
    return
  }
  func.func @transform_0(%arg0: i32, %arg1: i32) -> (i32, i32) {
    %c0_i32 = arith.constant 0 : i32
    %c0_i32_0 = arith.constant 0 : i32
    return %arg1, %c0_i32 : i32, i32
  }
  func.func @transform_1(%arg0: i32, %arg1: i32) -> (i32, i32) {
    %c0_i32 = arith.constant 0 : i32
    %c0_i32_0 = arith.constant 0 : i32
    %c0_i32_1 = arith.constant 0 : i32
    return %c0_i32, %c0_i32_0 : i32, i32
  }
  func.func @transform_2(%arg0: i32, %arg1: i32) -> (i32, i32) {
    %c0_i32 = arith.constant 0 : i32
    %c0_i32_0 = arith.constant 0 : i32
    %c0_i32_1 = arith.constant 0 : i32
    return %c0_i32, %c0_i32_0 : i32, i32
  }
  func.func @transform_3(%arg0: i32, %arg1: i32) -> (i32, i32) {
    %c0_i32 = arith.constant 0 : i32
    %c0_i32_0 = arith.constant 0 : i32
    %c0_i32_1 = arith.constant 0 : i32
    return %c0_i32, %c0_i32_0 : i32, i32
  }
  func.func @transform_4(%arg0: i32, %arg1: i32) -> (i32, i32) {
    %c0_i32 = arith.constant 0 : i32
    %c0_i32_0 = arith.constant 0 : i32
    %c0_i32_1 = arith.constant 0 : i32
    return %c0_i32, %c0_i32_0 : i32, i32
  }
  func.func @transform_5(%arg0: i32, %arg1: i32) -> (i32, i32) {
    %0 = arith.muli %arg0, %arg1 : i32
    %c0_i32 = arith.constant 0 : i32
    %c0_i32_0 = arith.constant 0 : i32
    return %0, %c0_i32 : i32, i32
  }
}

</mosaic_0001>

<llo_original>
// kernel: feature_interaction.1
$region0: #{feature_interaction.1}
  #allocation0 [shape = 'u32[]', space=smem, size = 0x4, offset = 0x4, fixed_abs, tag = 'smem constant byte address 0x4 - core index']
  #allocation1 [shape = 'u32[72,128]{1,0:T(1,128)}', space=vmem, size = 0x9000, scoped, tag = 'internal scratch']
  #allocation2 [shape = 'f32[2,64]{1,0:T(2,128)}', space=vmem, size = 0x400, scoped, tag = 'scratch operand']
  %s0 = inlined_call_operand.vmem [shape: f32[8,32], index: 0, kind: input, shape index: {}]
  %s1 = inlined_call_operand.vmem [shape: f32[32,64], index: 1, kind: input, shape index: {}]
  %s2 = inlined_call_operand.vmem [shape: f32[64,32], index: 2, kind: input, shape index: {}]
  %s3 = inlined_call_operand.vmem [shape: f32[2,64], index: 3, kind: input, shape index: {}]
  %s4 = inlined_call_operand.vmem [shape: f32[1,32], index: 4, kind: input, shape index: {}]
  %s5 = inlined_call_operand.hbm [shape: f32[8,32], index: 5, kind: output, shape index: {}]
  %s6 = sld [smem:[#allocation0]]
  $region69: #{feature_interaction.1} parent=0
    _
  %s8 = ssub.s32 1, %s6
  %s9 = scalar_select 0, %s8, %s6
  $region1: #{feature_interaction.1} parent=0
    #allocation3 [shape = 'u8[8192]{0}', space=vmem, size = 0x2000, scoped, tag = 'output window, operand 0']
    #allocation4 [shape = 's32[2]{0}', space=sflag, size = 0x8, scoped, tag = 'scoped memory for feature_interaction.1']
    %10 = vsyncpa [#allocation4], 0
    %s11 = scalar_lea.sflag [#allocation4], 1
    %12 = vsyncpa %s11, 0
    loop: start=0, step=1, limit=4
    $region2: #{feature_interaction.1} parent=1 // loop_pre_header
      _
    $region3: #{feature_interaction.1} parent=1 // loop_header
      %s14 = sphi 0, %s18
      %p15 = scmp.ge.s32.totalorder %s14, 4
      %s21 = sphi 0, %s33
      %s22 = sphi 0, %s29
      %s23 = sphi 0, %s21
      %s24 = sphi 0, %s22
      %s25 = sphi 0, %s23
      %s26 = sphi 0, %s24
      %s36 = sphi 0, %s38
      %s39 = sphi 0, %s36
      %s40 = sphi 0, %s39
      %s56 = sphi 0, %s40
      %s60 = sphi 0, %s60
      %s62 = sphi 0, %s60
      %s63 = sphi 0, %s62
      %s77 = sphi 0, %s63
      %s81 = sphi 0, %s81
      %s83 = sphi 0, %s81
      %s84 = sphi 0, %s83
      %s98 = sphi 0, %s84
      %s102 = sphi 0, %s102
      %s104 = sphi 0, %s102
      %s105 = sphi 0, %s104
      %s119 = sphi 0, %s105
      %s123 = sphi 0, %s123
      %s125 = sphi 0, %s123
      %s126 = sphi 0, %s125
      %s140 = sphi 0, %s126
      %s148 = sphi 0, %s150
      %s151 = sphi 0, %s148
      %s152 = sphi 0, %s151
      %s168 = sphi 0, %s152
    $region4: #{feature_interaction.1} parent=1 // loop_header_branch
      %17 = sbr.rel (%p15) target = $region8
    $region5: #{feature_interaction.1} parent=1 // loop_body
      %s19 = ssub.s32 %s14, 1
      %s20 = ssub.s32 %s14, 2
      %s27 = sadd.s32 1, %s22
      %p28 = scmp.ge.s32.totalorder %s27, 1
      %s29 = scalar_select %p28, 0, %s27
      %s30 = sadd.s32 1, %s21
      %s31 = scalar_select %p28, %s30, %s21
      %p32 = scmp.ge.s32.totalorder %s31, 2
      %s33 = scalar_select %p32, 0, %s31
      %s34 = ssub.s32 %s22, %s29
      %p35 = scmp.eq.s32.totalorder %s34, 0
      %s37 = sadd.s32 %s36, 1
      %s38 = scalar_select %p35, %s36, %s37
      %p41 = pneg %p35
      %p42 = scmp.eq.s32.totalorder %s14, 1
      %p43 = por %p41, %p42
      %p44 = scmp.ne.s32.totalorder %s36, %s39
      %p45 = scmp.eq.s32.totalorder %s14, 0
      %p46 = por %p44, %p45
      %p47 = scmp.ne.s32.totalorder %s36, %s39
      %p48 = scmp.eq.s32.totalorder %s19, 1
      %p49 = por %p47, %p48
      %p50 = scmp.ne.s32.totalorder %s39, %s40
      %p51 = scmp.eq.s32.totalorder %s19, 0
      %p52 = por %p50, %p51
      %p53 = scmp.ne.s32.totalorder %s39, %s40
      %p54 = scmp.eq.s32.totalorder %s20, 1
      %p55 = por %p53, %p54
      %p57 = scmp.ne.s32.totalorder %s40, %s56
      %p58 = scmp.eq.s32.totalorder %s20, 0
      %p59 = por %p57, %p58
      %s61 = sadd.s32 %s60, 1
      %p64 = scmp.eq.s32.totalorder %s14, 1
      %p65 = scmp.ne.s32.totalorder %s60, %s62
      %p66 = scmp.eq.s32.totalorder %s14, 0
      %p67 = por %p65, %p66
      %p68 = scmp.ne.s32.totalorder %s60, %s62
      %p69 = scmp.eq.s32.totalorder %s19, 1
      %p70 = por %p68, %p69
      %p71 = scmp.ne.s32.totalorder %s62, %s63
      %p72 = scmp.eq.s32.totalorder %s19, 0
      %p73 = por %p71, %p72
      %p74 = scmp.ne.s32.totalorder %s62, %s63
      %p75 = scmp.eq.s32.totalorder %s20, 1
      %p76 = por %p74, %p75
      %p78 = scmp.ne.s32.totalorder %s63, %s77
      %p79 = scmp.eq.s32.totalorder %s20, 0
      %p80 = por %p78, %p79
      %s82 = sadd.s32 %s81, 1
      %p85 = scmp.eq.s32.totalorder %s14, 1
      %p86 = scmp.ne.s32.totalorder %s81, %s83
      %p87 = scmp.eq.s32.totalorder %s14, 0
      %p88 = por %p86, %p87
      %p89 = scmp.ne.s32.totalorder %s81, %s83
      %p90 = scmp.eq.s32.totalorder %s19, 1
      %p91 = por %p89, %p90
      %p92 = scmp.ne.s32.totalorder %s83, %s84
      %p93 = scmp.eq.s32.totalorder %s19, 0
      %p94 = por %p92, %p93
      %p95 = scmp.ne.s32.totalorder %s83, %s84
      %p96 = scmp.eq.s32.totalorder %s20, 1
      %p97 = por %p95, %p96
      %p99 = scmp.ne.s32.totalorder %s84, %s98
      %p100 = scmp.eq.s32.totalorder %s20, 0
      %p101 = por %p99, %p100
      %s103 = sadd.s32 %s102, 1
      %p106 = scmp.eq.s32.totalorder %s14, 1
      %p107 = scmp.ne.s32.totalorder %s102, %s104
      %p108 = scmp.eq.s32.totalorder %s14, 0
      %p109 = por %p107, %p108
      %p110 = scmp.ne.s32.totalorder %s102, %s104
      %p111 = scmp.eq.s32.totalorder %s19, 1
      %p112 = por %p110, %p111
      %p113 = scmp.ne.s32.totalorder %s104, %s105
      %p114 = scmp.eq.s32.totalorder %s19, 0
      %p115 = por %p113, %p114
      %p116 = scmp.ne.s32.totalorder %s104, %s105
      %p117 = scmp.eq.s32.totalorder %s20, 1
      %p118 = por %p116, %p117
      %p120 = scmp.ne.s32.totalorder %s105, %s119
      %p121 = scmp.eq.s32.totalorder %s20, 0
      %p122 = por %p120, %p121
      %s124 = sadd.s32 %s123, 1
      %p127 = scmp.eq.s32.totalorder %s14, 1
      %p128 = scmp.ne.s32.totalorder %s123, %s125
      %p129 = scmp.eq.s32.totalorder %s14, 0
      %p130 = por %p128, %p129
      %p131 = scmp.ne.s32.totalorder %s123, %s125
      %p132 = scmp.eq.s32.totalorder %s19, 1
      %p133 = por %p131, %p132
      %p134 = scmp.ne.s32.totalorder %s125, %s126
      %p135 = scmp.eq.s32.totalorder %s19, 0
      %p136 = por %p134, %p135
      %p137 = scmp.ne.s32.totalorder %s125, %s126
      %p138 = scmp.eq.s32.totalorder %s20, 1
      %p139 = por %p137, %p138
      %p141 = scmp.ne.s32.totalorder %s126, %s140
      %p142 = scmp.eq.s32.totalorder %s20, 0
      %p143 = por %p141, %p142
      %s144 = smul.u32 %s21, %s22
      %s145 = smul.u32 %s33, %s29
      %s146 = ssub.s32 %s144, %s145
      %p147 = scmp.eq.s32.totalorder %s146, 0
      %s149 = sadd.s32 %s148, 1
      %s150 = scalar_select %p147, %s148, %s149
      %p153 = pneg %p147
      %p154 = scmp.eq.s32.totalorder %s14, 1
      %p155 = por %p153, %p154
      %p156 = scmp.ne.s32.totalorder %s148, %s151
      %p157 = scmp.eq.s32.totalorder %s14, 0
      %p158 = por %p156, %p157
      %p159 = scmp.ne.s32.totalorder %s148, %s151
      %p160 = scmp.eq.s32.totalorder %s19, 1
      %p161 = por %p159, %p160
      %p162 = scmp.ne.s32.totalorder %s151, %s152
      %p163 = scmp.eq.s32.totalorder %s19, 0
      %p164 = por %p162, %p163
      %p165 = scmp.ne.s32.totalorder %s151, %s152
      %p166 = scmp.eq.s32.totalorder %s20, 1
      %p167 = por %p165, %p166
      %p169 = scmp.ne.s32.totalorder %s152, %s168
      %p170 = scmp.eq.s32.totalorder %s20, 0
      %p171 = por %p169, %p170
      %p172 = scmp.le.s32.totalorder 1, %s14
      %p173 = scmp.lt.s32.totalorder %s14, 3
      %p174 = pnand %p172, %p173
      %p175 = pneg %p174
      // Predicated region
      $region9: #{feature_interaction.1} parent=5 // pred_check
        _
      $region10: #{feature_interaction.1} parent=5 // pred_check_branch
        %177 = sbr.rel (%p174) target = $region12
      $region11: #{feature_interaction.1} parent=5 // pred_region
        %s178 = ssub.s32 %s14, 1
        // Predicated region
        $region13: #{feature_interaction.1} parent=11 // pred_check
          %p179 = pneg %p52
        $region14: #{feature_interaction.1} parent=11 // pred_check_branch
          %181 = sbr.rel (%p179) target = $region16
        $region15: #{feature_interaction.1} parent=11 // pred_region
          %p182 = scmp.lt.s32.totalorder %s24, 0
          %s183 = scalar_select %p182, %s24, 0
          %s184 = smul.addr %s183, 8
          %s185 = scalar_lea.vmem %s0, %s184
        $region16: #{feature_interaction.1} parent=11 // pred_fallthru
          _
        // Predicated region
        $region17: #{feature_interaction.1} parent=11 // pred_check
          %p186 = pneg %p73
        $region18: #{feature_interaction.1} parent=11 // pred_check_branch
          %188 = sbr.rel (%p186) target = $region20
        $region19: #{feature_interaction.1} parent=11 // pred_region
          _
        $region20: #{feature_interaction.1} parent=11 // pred_fallthru
          _
        // Predicated region
        $region21: #{feature_interaction.1} parent=11 // pred_check
          %p189 = pneg %p94
        $region22: #{feature_interaction.1} parent=11 // pred_check_branch
          %191 = sbr.rel (%p189) target = $region24
        $region23: #{feature_interaction.1} parent=11 // pred_region
          _
        $region24: #{feature_interaction.1} parent=11 // pred_fallthru
          _
        // Predicated region
        $region25: #{feature_interaction.1} parent=11 // pred_check
          %p192 = pneg %p115
        $region26: #{feature_interaction.1} parent=11 // pred_check_branch
          %194 = sbr.rel (%p192) target = $region28
        $region27: #{feature_interaction.1} parent=11 // pred_region
          _
        $region28: #{feature_interaction.1} parent=11 // pred_fallthru
          _
        // Predicated region
        $region29: #{feature_interaction.1} parent=11 // pred_check
          %p195 = pneg %p136
        $region30: #{feature_interaction.1} parent=11 // pred_check_branch
          %197 = sbr.rel (%p195) target = $region32
        $region31: #{feature_interaction.1} parent=11 // pred_region
          _
        $region32: #{feature_interaction.1} parent=11 // pred_fallthru
          _
      $region12: #{feature_interaction.1} parent=5 // pred_fallthru
        _
      %p198 = scmp.lt.s32.totalorder %s14, 2
      // Predicated region
      $region33: #{feature_interaction.1} parent=5 // pred_check
        %p199 = pneg %p198
      $region34: #{feature_interaction.1} parent=5 // pred_check_branch
        %201 = sbr.rel (%p199) target = $region36
      $region35: #{feature_interaction.1} parent=5 // pred_region
        _
      $region36: #{feature_interaction.1} parent=5 // pred_fallthru
        _
      %p202 = scmp.le.s32.totalorder 1, %s14
      %p203 = scmp.lt.s32.totalorder %s14, 3
      %p204 = pnand %p202, %p203
      %p205 = pneg %p204
      // Predicated region
      $region37: #{feature_interaction.1} parent=5 // pred_check
        _
      $region38: #{feature_interaction.1} parent=5 // pred_check_branch
        %207 = sbr.rel (%p204) target = $region40
      $region39: #{feature_interaction.1} parent=5 // pred_region
        %s208 = ssub.s32 %s14, 1
        %p209 = scmp.lt.s32.totalorder %s24, 0
        %s210 = scalar_select %p209, %s24, 0
        %s211 = smul.addr %s210, 8
        %s212 = scalar_lea.vmem %s0, %s211
        %p213 = pneg %p52
        %p214 = pneg %p49
        %p215 = pneg %p73
        %p216 = pneg %p70
        %p217 = pneg %p94
        %p218 = pneg %p91
        %p219 = pneg %p115
        %p220 = pneg %p112
        %p221 = pneg %p136
        %p222 = pneg %p133
        %p223 = pneg %p164
        %p224 = pneg %p161
        %s225 = sand.u32 %s151, 1
        %s226 = scalar_lea.sflag [#allocation4], %s225
        %s227 = sand.u32 %s151, 1
        %s228 = smul.addr %s227, 8
        %s229 = scalar_lea.vmem [#allocation3], %s228
        %p230 = scmp.lt.s32.totalorder %s24, 0
        %s231 = scalar_select %p230, %s24, 0
        %s232 = smul.addr %s231, 8
        %s233 = scalar_lea.vmem %s0, %s232
        %s234 = smul.u32 %s23, %s24
        %v235 = vld [vmem:[%s233] sm:$0xff]
        %v236 = vld [vmem:[%s1] sm:$0xff]
        %v237 = vld [vmem:[%s1 + $0x8] sm:$0xff]
        %v238 = vld [vmem:[%s1 + $0x10] sm:$0xff]
        %v239 = vld [vmem:[%s1 + $0x18] sm:$0xff]
        %vm240 = vcmask 261120
        %v242 = vsel %vm240, %v235, 0
        %244 = vmatpush.msra.mxu0 0.0
        %245 = vmatpush.msra.mxu0 0.0
        %246 = vmatpush.msra.mxu0 0.0
        %247 = vmatpush.msra.mxu0 0.0
        %248 = vmatpush.msra.mxu0 0.0
        %249 = vmatpush.msra.mxu0 0.0
        %250 = vmatpush.msra.mxu0 0.0
        %251 = vmatpush.msra.mxu0 0.0
        %252 = vmatpush.msra.mxu0 0.0
        %253 = vmatpush.msra.mxu0 0.0
        %254 = vmatpush.msra.mxu0 0.0
        %255 = vmatpush.msra.mxu0 0.0
        %256 = vmatpush.msra.mxu0 %v239
        %257 = vmatpush.msra.mxu0 %v238
        %258 = vmatpush.msra.mxu0 %v237
        %259 = vmatpush.msra.mxu0 %v236
        %260 = vmatmul.f32.gmra.mxu0 %v242
        %v261 = vpop.f32.mrf.mxu0
        %v262 = vadd.f32 0.0, %v261
        %263 = vdwg.mxu0
        %p264 = scmp.eq.s32.totalorder %s23, 0
        %p265 = scmp.eq.s32.totalorder %s24, 0
        %p266 = pnand %p264, %p265
        %p267 = pneg %p266
        // Predicated region
        $region41: #{feature_interaction.1} parent=39 // pred_check
          _
        $region42: #{feature_interaction.1} parent=39 // pred_check_branch
          %269 = sbr.rel (%p266) target = $region44
        $region43: #{feature_interaction.1} parent=39 // pred_region
          %vm270 = vcmask 517120
          %271 = vst.msk [vmem:[#allocation2] sm:$0x3] %vm270, 0.0
        $region44: #{feature_interaction.1} parent=39 // pred_fallthru
          _
        // Predicated region
        $region45: #{feature_interaction.1} parent=39 // pred_check
          %p272 = pneg %p264
        $region46: #{feature_interaction.1} parent=39 // pred_check_branch
          %274 = sbr.rel (%p272) target = $region48
        $region47: #{feature_interaction.1} parent=39 // pred_region
          %v275 = vld [vmem:[#allocation2] sm:$0x1]
          %vm276 = vcmask 523264
          %v277 = vsel %vm276, %v262, 0.0
          %v278 = vrot.slane %v277, 4
          %v279 = vadd.f32 %v277, %v278
          %v280 = vrot.slane %v279, 2
          %v281 = vadd.f32 %v279, %v280
          %v282 = vrot.slane %v281, 1
          %v283 = vadd.f32 %v281, %v282
          %v284 = vadd.f32 %v275, %v283
          %vm285 = vcmask 516096
          %286 = vst.msk [vmem:[#allocation2] sm:$0x1] %vm285, %v284
          %v287 = vld [vmem:[#allocation2 + $0x1] sm:$0x1]
          %v288 = vmul.f32 %v262, %v262
          %v289 = vsel %vm276, %v288, 0.0
          %v290 = vrot.slane %v289, 4
          %v291 = vadd.f32 %v289, %v290
          %v292 = vrot.slane %v291, 2
          %v293 = vadd.f32 %v291, %v292
          %v294 = vrot.slane %v293, 1
          %v295 = vadd.f32 %v293, %v294
          %v296 = vadd.f32 %v287, %v295
          %297 = vst.msk [vmem:[#allocation2 + $0x1] sm:$0x1] %vm285, %v296
        $region48: #{feature_interaction.1} parent=39 // pred_fallthru
          _
        %p298 = scmp.eq.s32.totalorder %s23, 1
        %p299 = pnand %p298, %p265
        %p300 = pneg %p299
        // Predicated region
        $region49: #{feature_interaction.1} parent=39 // pred_check
          _
        $region50: #{feature_interaction.1} parent=39 // pred_check_branch
          %302 = sbr.rel (%p299) target = $region52
        $region51: #{feature_interaction.1} parent=39 // pred_region
          %v303 = vld [vmem:[#allocation2] sm:$0x1]
          %v304 = vmul.f32 %v303, 0.125
          %v305 = vld [vmem:[#allocation2 + $0x1] sm:$0x1]
          %v306 = vmul.f32 %v305, 0.125
          %v307 = vmul.f32 %v304, %v304
          %v308 = vsub.f32 %v306, %v307
          %v309 = vld [vmem:[%s3] sm:$0x1]
          %v310 = vadd.f32 %v308, 1e-05
          %v311 = vrsqrt.pop %v310
          %v312 = vmul.f32 %v311, %v310
          %v313 = vmul.f32 %v312, %v311
          %v314 = vmul.f32 0.5, %v313
          %v315 = vsub.f32 1.5, %v314
          %v316 = vmul.f32 %v311, %v315
          %vm317 = vweird.f32 %v310
          %vm318 = vweird.f32 %v311
          %vm319 = vmor %vm317, %vm318
          %v320 = vsel %vm319, %v311, %v316
          %v321 = vmul.f32 %v309, %v320
          %v322 = vld [vmem:[%s3 + $0x1] sm:$0x1]
          %v323 = vmul.f32 %v304, %v321
          %v324 = vsub.f32 %v322, %v323
          %vm325 = vcmask 516096
          %326 = vst.msk [vmem:[#allocation2] sm:$0x1] %vm325, %v321
          %327 = vst.msk [vmem:[#allocation2 + $0x1] sm:$0x1] %vm325, %v324
        $region52: #{feature_interaction.1} parent=39 // pred_fallthru
          _
        // Predicated region
        $region53: #{feature_interaction.1} parent=39 // pred_check
          %p328 = pneg %p298
        $region54: #{feature_interaction.1} parent=39 // pred_check_branch
          %330 = sbr.rel (%p328) target = $region56
        $region55: #{feature_interaction.1} parent=39 // pred_region
          %v331 = vld [vmem:[#allocation2] sm:$0x1]
          %v332 = vperm.slane %v331, 0
          %v333 = vmul.f32 %v262, %v332
          %v334 = vld [vmem:[#allocation2 + $0x1] sm:$0x1]
          %v335 = vperm.slane %v334, 0
          %v336 = vadd.f32 %v333, %v335
          %v337 = vmax.f32 %v336, 0.0
          %v338 = vld [vmem:[%s2] sm:$0xff]
          %v339 = vld [vmem:[%s2 + $0x8] sm:$0xff]
          %v340 = vld [vmem:[%s2 + $0x10] sm:$0xff]
          %v341 = vld [vmem:[%s2 + $0x18] sm:$0xff]
          %v342 = vld [vmem:[%s2 + $0x20] sm:$0xff]
          %v343 = vld [vmem:[%s2 + $0x28] sm:$0xff]
          %v344 = vld [vmem:[%s2 + $0x30] sm:$0xff]
          %v345 = vld [vmem:[%s2 + $0x38] sm:$0xff]
          %v346 = vld [vmem:[%s4] sm:$0x1]
          %v348 = vperm.slane %v346, 0
          %vm350 = vcmask 523264
          %v352 = vsel %vm350, %v337, 0
          %354 = vmatpush.msra.mxu0 0.0
          %355 = vmatpush.msra.mxu0 0.0
          %356 = vmatpush.msra.mxu0 0.0
          %357 = vmatpush.msra.mxu0 0.0
          %358 = vmatpush.msra.mxu0 0.0
          %359 = vmatpush.msra.mxu0 0.0
          %360 = vmatpush.msra.mxu0 0.0
          %361 = vmatpush.msra.mxu0 0.0
          %362 = vmatpush.msra.mxu0 %v345
          %363 = vmatpush.msra.mxu0 %v344
          %364 = vmatpush.msra.mxu0 %v343
          %365 = vmatpush.msra.mxu0 %v342
          %366 = vmatpush.msra.mxu0 %v341
          %367 = vmatpush.msra.mxu0 %v340
          %368 = vmatpush.msra.mxu0 %v339
          %369 = vmatpush.msra.mxu0 %v338
          %370 = vmatmul.f32.gmra.mxu0 %v352
          %v371 = vpop.f32.mrf.mxu0
          %v372 = vadd.f32 %v348, %v371
          %373 = vdwg.mxu0
          %v374 = vadd.f32 %v372, %v235
          %375 = vst.msk [vmem:[%s229] sm:$0xff] %vm240, %v374
        $region56: #{feature_interaction.1} parent=39 // pred_fallthru
          _
        %s376 = sand.u32 %s151, 1
        %s377 = scalar_lea.sflag [#allocation4], %s376
        %s378 = sand.u32 %s151, 1
        %s379 = smul.addr %s378, 8
        %s380 = scalar_lea.vmem [#allocation3], %s379
        // Predicated region
        $region57: #{feature_interaction.1} parent=39 // pred_check
          %p381 = pneg %p161
        $region58: #{feature_interaction.1} parent=39 // pred_check_branch
          %383 = sbr.rel (%p381) target = $region60
        $region59: #{feature_interaction.1} parent=39 // pred_region
          %s384 = smul.u32 %s23, %s24
          %386 = vsyncadd %s377, 0
          %s387 = smul.addr %s384, 8
          %s388 = scalar_lea.hbm %s5, %s387
          %s390 = sshll.u32 %s380, 4
          %s391 = int_to_ptr.vmem [resolvable:$true] %s390
          %s392 = sshll.u32 %s388, 4
          %s393 = int_to_ptr.hbm [resolvable:$true] %s392
          %395 = dma.vmem_to_hbm [thread:$0]  %s391, 128, %s393, %s377
        $region60: #{feature_interaction.1} parent=39 // pred_fallthru
          _
      $region40: #{feature_interaction.1} parent=5 // pred_fallthru
        _
      %p396 = scmp.le.s32.totalorder 2, %s14
      // Predicated region
      $region61: #{feature_interaction.1} parent=5 // pred_check
        %p397 = pneg %p396
      $region62: #{feature_interaction.1} parent=5 // pred_check_branch
        %399 = sbr.rel (%p397) target = $region64
      $region63: #{feature_interaction.1} parent=5 // pred_region
        %s400 = ssub.s32 %s14, 2
        // Predicated region
        $region65: #{feature_interaction.1} parent=63 // pred_check
          %p401 = pneg %p167
        $region66: #{feature_interaction.1} parent=63 // pred_check_branch
          %403 = sbr.rel (%p401) target = $region68
        $region67: #{feature_interaction.1} parent=63 // pred_region
          %s404 = sand.u32 %s152, 1
          %s405 = scalar_lea.sflag [#allocation4], %s404
          %s406 = sand.u32 %s152, 1
          %s407 = smul.addr %s406, 8
          %s408 = scalar_lea.vmem [#allocation3], %s407
          %410 = dma.done %s405, 128
        $region68: #{feature_interaction.1} parent=63 // pred_fallthru
          _
      $region64: #{feature_interaction.1} parent=5 // pred_fallthru
        _
    $region6: #{feature_interaction.1} parent=1 // loop_footer
      %s18 = sadd.s32 1, %s14
    $region7: #{feature_interaction.1} parent=1 // loop_footer_branch
      %13 = sbr.rel target = $region3
    $region8: #{feature_interaction.1} parent=1 // loop_exit
      _
    %411 = vsyncpa [#allocation4], 1
    %s412 = scalar_lea.sflag [#allocation4], 1
    %413 = vsyncpa %s412, 1

</llo_original>
